<compile_context>
chip_gen: v7x
topology: tpu7x:2x2x1
jax: 0.10.0
libtpu: 0.0.40
codegen_flags: <defaults>
</compile_context>

<pallas_src>
import functools
import math

import jax
import jax.numpy as jnp
import numpy as np
from jax.experimental import pallas as pl
from jax.experimental.pallas import tpu as pltpu

PI = math.pi
LANE = 128
# Double-buffered weight-stream VMEM budget (bytes); conservative for v5e/v7x.
_WEIGHT_STREAM_BUDGET = 16 * 1024 * 1024


def _round_up(x, m):
    return ((x + m - 1) // m) * m


def _cov_kernel(x2_ref, w_ref, out_ref, acc_ref, *, m_ab_pad, m_c_pad, m_d_pad):
    """One grid step = one tile of the P (spatial) reduction axis."""
    k = pl.program_id(0)

    @pl.when(k == 0)
    def _():
        acc_ref[...] = jnp.zeros_like(acc_ref)

    # Spectral power for this tile of the plane (VPU), then one fused MXU
    # reduction against the whole weight slab.
    xr = x2_ref[0:1, :]
    xi = x2_ref[1:2, :]
    power = xr * xr + xi * xi                                   # (1, tile_p)
    acc_ref[...] += jnp.dot(power, w_ref[...],
                            preferred_element_type=jnp.float32)  # (1, W_COLS)

    @pl.when(k == pl.num_programs(0) - 1)
    def _():
        acc = acc_ref[...]
        off_c1 = m_ab_pad
        off_c2 = off_c1 + m_c_pad
        off_d1 = off_c2 + m_c_pad
        off_d2 = off_d1 + m_d_pad
        ab = acc[:, :m_ab_pad]
        c1 = acc[:, off_c1:off_c2]
        c2 = acc[:, off_c2:off_d1]
        d1 = acc[:, off_d1:off_d2]
        d2 = acc[:, off_d2:]
        # Lane-dense, 128-aligned slice stores into a single output slab.
        out_ref[:, :m_ab_pad] = ab
        out_ref[:, m_ab_pad:m_ab_pad + m_c_pad] = c1 * c1 + c2 * c2
        out_ref[:, m_ab_pad + m_c_pad:] = d1 * d1 + d2 * d2


def precompute_cov_weights(phi_r, phi_i, psi_r, psi_i):
    """Build the fused, scale-folded, lane-padded weight slab once; reuse across calls."""
    f32 = jnp.float32
    N = phi_r.shape[0]
    K, J = psi_r.shape[0], psi_r.shape[1]
    P = N * N
    scale = 1.0 / ((2.0 * PI) ** 2 * float(P))  # 1/(2pi)^2 * mean over the plane

    phi_r = phi_r.astype(f32)
    phi_i = phi_i.astype(f32)
    psi_r = psi_r.astype(f32)
    psi_i = psi_i.astype(f32)

    m_ab = 1 + K * J
    m_c = K * (J - 1)
    m_d = (K - 1) * J
    m_ab_pad = _round_up(max(m_ab, 1), LANE)
    m_c_pad = _round_up(max(m_c, 1), LANE)
    m_d_pad = _round_up(max(m_d, 1), LANE)

    def pad_rows(w, target):
        return jnp.pad(w, ((0, target - w.shape[0]), (0, 0)))

    w_phi = (phi_r ** 2 + phi_i ** 2).reshape(1, P)
    w_psi = (psi_r ** 2 + psi_i ** 2).reshape(K * J, P)
    w_ab = jnp.concatenate([w_phi, w_psi], axis=0)                      # (m_ab, P)

    w_c1 = (psi_r[:, :J - 1] * psi_r[:, 1:] +
            psi_i[:, :J - 1] * psi_i[:, 1:]).reshape(m_c, P)
    w_c2 = (psi_i[:, :J - 1] * psi_r[:, 1:] -
            psi_r[:, :J - 1] * psi_i[:, 1:]).reshape(m_c, P)
    w_d1 = (psi_r[:K - 1] * psi_r[1:] +
            psi_i[:K - 1] * psi_i[1:]).reshape(m_d, P)
    w_d2 = (psi_i[:K - 1] * psi_r[1:] -
            psi_r[:K - 1] * psi_i[1:]).reshape(m_d, P)

    # Fused slab, scale folded in (scale is applied before the squaring in the
    # reference, so folding it into the linear weights is exactly equivalent).
    w_all = jnp.concatenate([
        pad_rows(w_ab, m_ab_pad),
        pad_rows(w_c1, m_c_pad), pad_rows(w_c2, m_c_pad),
        pad_rows(w_d1, m_d_pad), pad_rows(w_d2, m_d_pad),
    ], axis=0) * jnp.asarray(scale, f32)                                # (W_COLS, P)

    w_cols = m_ab_pad + 2 * m_c_pad + 2 * m_d_pad

    # Tile the P reduction axis so the double-buffered weight stream fits VMEM.
    max_tile_p = max(LANE,
                     (_WEIGHT_STREAM_BUDGET // (2 * w_cols * 4)) // LANE * LANE)
    p_lane = _round_up(P, LANE)
    tile_p = min(max_tile_p, p_lane)
    num_tiles = -(-p_lane // tile_p)
    p_pad = num_tiles * tile_p

    w_all = jnp.pad(w_all, ((0, 0), (0, p_pad - P))).T                  # (p_pad, W_COLS)

    meta = dict(N=N, K=K, J=J, P=P, p_pad=p_pad, tile_p=tile_p,
                num_tiles=num_tiles, m_ab=m_ab, m_c=m_c, m_d=m_d,
                m_ab_pad=m_ab_pad, m_c_pad=m_c_pad, m_d_pad=m_d_pad,
                w_cols=w_cols)
    return w_all, meta


def scattering_2d_cov_apply(x_hat, w_all, meta):
    """Hot path: one x_hat against a precomputed weight slab."""
    f32 = jnp.float32
    P, p_pad = meta["P"], meta["p_pad"]
    tile_p, num_tiles = meta["tile_p"], meta["num_tiles"]
    m_ab, m_c, m_d = meta["m_ab"], meta["m_c"], meta["m_d"]
    m_ab_pad, m_c_pad, m_d_pad = meta["m_ab_pad"], meta["m_c_pad"], meta["m_d_pad"]
    w_cols = meta["w_cols"]
    out_w = m_ab_pad + m_c_pad + m_d_pad

    # Single (2, P_pad) activation stream (real row 0, imag row 1).
    x2 = jnp.moveaxis(x_hat.astype(f32), -1, 0).reshape(2, P)
    x2 = jnp.pad(x2, ((0, 0), (0, p_pad - P)))

    kernel = functools.partial(_cov_kernel, m_ab_pad=m_ab_pad,
                               m_c_pad=m_c_pad, m_d_pad=m_d_pad)
    out = pl.pallas_call(
        kernel,
        grid=(num_tiles,),
        in_specs=[
            pl.BlockSpec((2, tile_p), lambda k: (0, k)),
            pl.BlockSpec((tile_p, w_cols), lambda k: (k, 0)),
        ],
        out_specs=pl.BlockSpec((1, out_w), lambda k: (0, 0)),
        out_shape=jax.ShapeDtypeStruct((1, out_w), f32),
        scratch_shapes=[pltpu.VMEM((1, w_cols), f32)],
        compiler_params=pltpu.CompilerParams(
            dimension_semantics=("arbitrary",),     # P is a reduction axis
            vmem_limit_bytes=32 * 1024 * 1024,
        ),
    )(x2, w_all)

    # Glue: strip lane padding and concatenate in torch.cat order.
    ab = out[0, :m_ab]
    c = out[0, m_ab_pad:m_ab_pad + m_c]
    d = out[0, m_ab_pad + m_c_pad:m_ab_pad + m_c_pad + m_d]
    return jnp.concatenate([ab, c, d], axis=0)


def scattering_2d_cov(x_hat, phi_r, phi_i, psi_r, psi_i):
    """x_hat: (N, N, 2); phi_*: (N, N); psi_*: (K, J, N, N)."""
    # TODO(synk): for repeated calls, build the weights once with
    # precompute_cov_weights and call scattering_2d_cov_apply directly.
    w_all, meta = precompute_cov_weights(phi_r, phi_i, psi_r, psi_i)
    return scattering_2d_cov_apply(x_hat, w_all, meta)


def _reference(x_hat, phi_r, phi_i, psi_r, psi_i):
    """Pure-JAX transcription of the PyTorch forward, for correctness check."""
    K, J = psi_r.shape[0], psi_r.shape[1]
    sc = 1.0 / (2.0 * PI) ** 2
    power = x_hat[..., 0] ** 2 + x_hat[..., 1] ** 2
    a = sc * jnp.mean(power * (phi_r ** 2 + phi_i ** 2))
    b = sc * jnp.mean(power * (psi_r ** 2 + psi_i ** 2), axis=(2, 3))
    c1 = sc * jnp.mean(power * (psi_r[:, :J - 1] * psi_r[:, 1:] +
                                psi_i[:, :J - 1] * psi_i[:, 1:]), axis=(2, 3))
    c2 = sc * jnp.mean(power * (psi_i[:, :J - 1] * psi_r[:, 1:] -
                                psi_r[:, :J - 1] * psi_i[:, 1:]), axis=(2, 3))
    d1 = sc * jnp.mean(power * (psi_r[:K - 1] * psi_r[1:] +
                                psi_i[:K - 1] * psi_i[1:]), axis=(2, 3))
    d2 = sc * jnp.mean(power * (psi_i[:K - 1] * psi_r[1:] -
                                psi_r[:K - 1] * psi_i[1:]), axis=(2, 3))
    return jnp.concatenate([a[None], b.reshape(-1),
                            (c1 ** 2 + c2 ** 2).reshape(-1),
                            (d1 ** 2 + d2 ** 2).reshape(-1)], axis=0)


if __name__ == "__main__":
    # Small shapes: N=16 spatial grid, K=4 orientations, J=3 scales.
    N, K, J = 16, 4, 3
    key = jax.random.PRNGKey(0)
    k_x, k_pr, k_pi, k_sr, k_si = jax.random.split(key, 5)

    x_hat = jax.random.normal(k_x, (N, N, 2), dtype=jnp.float32)
    phi_hat_real = jax.random.normal(k_pr, (N, N), dtype=jnp.float32)
    phi_hat_imag = jax.random.normal(k_pi, (N, N), dtype=jnp.float32)
    psi_hat_real = jax.random.normal(k_sr, (K, J, N, N), dtype=jnp.float32)
    psi_hat_imag = jax.random.normal(k_si, (K, J, N, N), dtype=jnp.float32)

    s = scattering_2d_cov(x_hat, phi_hat_real, phi_hat_imag,
                          psi_hat_real, psi_hat_imag)
    s = jax.block_until_ready(s)

    s_ref = _reference(x_hat, phi_hat_real, phi_hat_imag,
                       psi_hat_real, psi_hat_imag)
    assert s.shape == (1 + K * J + K * (J - 1) + (K - 1) * J,)
    np.testing.assert_allclose(np.asarray(s), np.asarray(s_ref),
                               rtol=1e-4, atol=1e-5)
    print("KERNEL_OK")
</pallas_src>

<mosaic_0001>
module attributes {stable_mosaic.version = 11 : i64} {
  func.func @_cov_kernel(%arg0: i32, %arg1: memref<2x256xf32, #tpu.memory_space<vmem>>, %arg2: memref<256x640xf32, #tpu.memory_space<vmem>>, %arg3: memref<1x384xf32, #tpu.memory_space<vmem>>, %arg4: memref<1x640xf32, #tpu.memory_space<vmem>>) attributes {dimension_semantics = [#tpu.dimension_semantics<arbitrary>], iteration_bounds = array<i64: 1>, scalar_prefetch = 0 : i64, scratch_operands = 1 : i64, tpu.core_type = #tpu.core_type<tc>, window_params = [{transform_indices = @transform_0, window_bounds = array<i64: 2, 256>}, {transform_indices = @transform_1, window_bounds = array<i64: 256, 640>}, {pipeline_mode = #tpu.pipeline_mode<synchronous>, transform_indices = @transform_2, window_bounds = array<i64: 1, 384>}]} {
    %c0_i32 = arith.constant 0 : i32
    %0 = arith.cmpi eq, %arg0, %c0_i32 : i32
    %1 = arith.extui %0 : i1 to i32
    %c0_i32_0 = arith.constant 0 : i32
    %2 = arith.cmpi ne, %1, %c0_i32_0 : i32
    scf.if %2 {
      %cst_11 = arith.constant 0.000000e+00 : f32
      %16 = vector.broadcast %cst_11 : f32 to vector<1x640xf32>
      %c0_12 = arith.constant 0 : index
      %c0_13 = arith.constant 0 : index
      %17 = vector.load %arg4[%c0_12, %c0_13] : memref<1x640xf32, #tpu.memory_space<vmem>>, vector<1x640xf32>
      tpu.vector_store %arg4[%c0_12, %c0_13], %16 {strides = array<i32>} : memref<1x640xf32, #tpu.memory_space<vmem>>, vector<1x640xf32>,
    } else {
    }
    %c0 = arith.constant 0 : index
    %c0_1 = arith.constant 0 : index
    %3 = vector.load %arg1[%c0, %c0_1] : memref<2x256xf32, #tpu.memory_space<vmem>>, vector<1x256xf32>
    %c1 = arith.constant 1 : index
    %c0_2 = arith.constant 0 : index
    %4 = vector.load %arg1[%c1, %c0_2] : memref<2x256xf32, #tpu.memory_space<vmem>>, vector<1x256xf32>
    %5 = arith.mulf %3, %3 : vector<1x256xf32>
    %6 = arith.mulf %4, %4 : vector<1x256xf32>
    %7 = arith.addf %5, %6 : vector<1x256xf32>
    %c0_3 = arith.constant 0 : index
    %c0_4 = arith.constant 0 : index
    %8 = vector.load %arg4[%c0_3, %c0_4] : memref<1x640xf32, #tpu.memory_space<vmem>>, vector<1x640xf32>
    %c0_5 = arith.constant 0 : index
    %c0_6 = arith.constant 0 : index
    %9 = vector.load %arg2[%c0_5, %c0_6] : memref<256x640xf32, #tpu.memory_space<vmem>>, vector<256x640xf32>
    %cst = arith.constant dense<0.000000e+00> : vector<1x640xf32>
    %10 = tpu.matmul %7, %9, %cst {dimension_numbers = #tpu.dot_dimension_numbers<[1], [0], [0], [1], [0, 0, 1, 1], [], []>} : vector<1x256xf32>, vector<256x640xf32>, vector<1x640xf32> -> vector<1x640xf32>
    %11 = arith.addf %8, %10 : vector<1x640xf32>
    %c0_7 = arith.constant 0 : index
    %c0_8 = arith.constant 0 : index
    %12 = vector.load %arg4[%c0_7, %c0_8] : memref<1x640xf32, #tpu.memory_space<vmem>>, vector<1x640xf32>
    tpu.vector_store %arg4[%c0_7, %c0_8], %11 {strides = array<i32>} : memref<1x640xf32, #tpu.memory_space<vmem>>, vector<1x640xf32>,
    %c0_i32_9 = arith.constant 0 : i32
    %13 = arith.cmpi eq, %arg0, %c0_i32_9 : i32
    %14 = arith.extui %13 : i1 to i32
    %c0_i32_10 = arith.constant 0 : i32
    %15 = arith.cmpi ne, %14, %c0_i32_10 : i32
    scf.if %15 {
      %c0_11 = arith.constant 0 : index
      %c0_12 = arith.constant 0 : index
      %16 = vector.load %arg4[%c0_11, %c0_12] : memref<1x640xf32, #tpu.memory_space<vmem>>, vector<1x640xf32>
      %17 = vector.extract_strided_slice %16 {offsets = [0, 0], sizes = [1, 128], strides = [1, 1]} : vector<1x640xf32> to vector<1x128xf32>
      %18 = vector.extract_strided_slice %16 {offsets = [0, 128], sizes = [1, 128], strides = [1, 1]} : vector<1x640xf32> to vector<1x128xf32>
      %19 = vector.extract_strided_slice %16 {offsets = [0, 256], sizes = [1, 128], strides = [1, 1]} : vector<1x640xf32> to vector<1x128xf32>
      %20 = vector.extract_strided_slice %16 {offsets = [0, 384], sizes = [1, 128], strides = [1, 1]} : vector<1x640xf32> to vector<1x128xf32>
      %21 = vector.extract_strided_slice %16 {offsets = [0, 512], sizes = [1, 128], strides = [1, 1]} : vector<1x640xf32> to vector<1x128xf32>
      %c0_13 = arith.constant 0 : index
      %c0_14 = arith.constant 0 : index
      %22 = vector.load %arg3[%c0_13, %c0_14] : memref<1x384xf32, #tpu.memory_space<vmem>>, vector<1x128xf32>
      tpu.vector_store %arg3[%c0_13, %c0_14], %17 {strides = array<i32>} : memref<1x384xf32, #tpu.memory_space<vmem>>, vector<1x128xf32>,
      %23 = arith.mulf %18, %18 : vector<1x128xf32>
      %24 = arith.mulf %19, %19 : vector<1x128xf32>
      %25 = arith.addf %23, %24 : vector<1x128xf32>
      %c0_15 = arith.constant 0 : index
      %c128 = arith.constant 128 : index
      %26 = vector.load %arg3[%c0_15, %c128] : memref<1x384xf32, #tpu.memory_space<vmem>>, vector<1x128xf32>
      tpu.vector_store %arg3[%c0_15, %c128], %25 {strides = array<i32>} : memref<1x384xf32, #tpu.memory_space<vmem>>, vector<1x128xf32>,
      %27 = arith.mulf %20, %20 : vector<1x128xf32>
      %28 = arith.mulf %21, %21 : vector<1x128xf32>
      %29 = arith.addf %27, %28 : vector<1x128xf32>
      %c0_16 = arith.constant 0 : index
      %c256 = arith.constant 256 : index
      %30 = vector.load %arg3[%c0_16, %c256] : memref<1x384xf32, #tpu.memory_space<vmem>>, vector<1x128xf32>
      tpu.vector_store %arg3[%c0_16, %c256], %29 {strides = array<i32>} : memref<1x384xf32, #tpu.memory_space<vmem>>, vector<1x128xf32>,
    } else {
    }
    return
  }
  func.func @transform_0(%arg0: i32) -> (i32, i32) {
    %c0_i32 = arith.constant 0 : i32
    %c0_i32_0 = arith.constant 0 : i32
    return %c0_i32, %arg0 : i32, i32
  }
  func.func @transform_1(%arg0: i32) -> (i32, i32) {
    %c0_i32 = arith.constant 0 : i32
    %c0_i32_0 = arith.constant 0 : i32
    return %arg0, %c0_i32 : i32, i32
  }
  func.func @transform_2(%arg0: i32) -> (i32, i32) {
    %c0_i32 = arith.constant 0 : i32
    %c0_i32_0 = arith.constant 0 : i32
    %c0_i32_1 = arith.constant 0 : i32
    return %c0_i32, %c0_i32_0 : i32, i32
  }
}

</mosaic_0001>

<llo_original>
// kernel: tpu_custom_call.1
$region0: #{tpu_custom_call.1}
  #allocation0 [shape = 'u32[]', space=smem, size = 0x4, offset = 0x4, fixed_abs, tag = 'smem constant byte address 0x4 - core index']
  #allocation1 [shape = 'u32[144,128]{1,0:T(1,128)}', space=vmem, size = 0x12000, scoped, tag = 'internal scratch']
  #allocation2 [shape = 'f32[1,640]{1,0:T(1,128)}', space=vmem, size = 0xa00, scoped, tag = 'scratch operand']
  %s0 = inlined_call_operand.hbm [shape: f32[2,256], index: 0, kind: input, shape index: {}]
  %s1 = inlined_call_operand.hbm [shape: f32[256,640], index: 1, kind: input, shape index: {}]
  %s2 = inlined_call_operand.hbm [shape: f32[1,384], index: 2, kind: output, shape index: {}]
  %s3 = sld [smem:[#allocation0]]
  $region34: #{tpu_custom_call.1} parent=0
    _
  %s5 = ssub.s32 1, %s3
  %s6 = scalar_select 0, %s5, %s3
  $region1: #{tpu_custom_call.1} parent=0
    #allocation3 [shape = 'u8[2048]{0}', space=vmem, size = 0x800, scoped, tag = 'input window, operand 0, single buffered']
    #allocation4 [shape = 's32[1]{0}', space=sflag, size = 0x4, scoped, tag = 'scoped memory for tpu_custom_call.1']
    #allocation5 [shape = 's32[1]{0}', space=sflag, size = 0x4, scoped, tag = 'scoped memory for tpu_custom_call.1']
    #allocation6 [shape = 'u8[655360]{0}', space=vmem, size = 0xa0000, scoped, tag = 'input window, operand 1, single buffered']
    #allocation7 [shape = 's32[1]{0}', space=sflag, size = 0x4, scoped, tag = 'scoped memory for tpu_custom_call.1']
    #allocation8 [shape = 'u8[1536]{0}', space=vmem, size = 0x800, scoped, tag = 'output window, operand 0, single buffered']
    %7 = vsyncpa [#allocation4], 0
    %8 = vsyncpa [#allocation7], 0
    %9 = vsyncpa [#allocation5], 0
    // Predicated region
    $region2: #{tpu_custom_call.1} parent=1 // pred_check
      _
    $region3: #{tpu_custom_call.1} parent=1 // pred_check_branch
      %11 = sbr.rel (0) target = $region5
    $region4: #{tpu_custom_call.1} parent=1 // pred_region
      %s13 = ssub.s32 64, 64
      %14 = vsyncadd [#allocation4], %s13
      %s16 = sshll.u32 [#allocation3], 4
      %s17 = int_to_ptr.vmem [resolvable:$true] %s16
      %19 = dma.hbm_to_vmem [thread:$0]  %s0, 64, %s17, [#allocation4]
    $region5: #{tpu_custom_call.1} parent=1 // pred_fallthru
      _
    // Predicated region
    $region6: #{tpu_custom_call.1} parent=1 // pred_check
      _
    $region7: #{tpu_custom_call.1} parent=1 // pred_check_branch
      %21 = sbr.rel (0) target = $region9
    $region8: #{tpu_custom_call.1} parent=1 // pred_region
      %s23 = ssub.s32 20480, 20480
      %24 = vsyncadd [#allocation7], %s23
      %s25 = sshll.u32 [#allocation6], 4
      %s26 = int_to_ptr.vmem [resolvable:$true] %s25
      %31 = dma.hbm_to_vmem [thread:$0]  %s1, 20480, %s26, [#allocation7], 640, 640, 40
    $region9: #{tpu_custom_call.1} parent=1 // pred_fallthru
      _
    // Predicated region
    $region10: #{tpu_custom_call.1} parent=1 // pred_check
      _
    $region11: #{tpu_custom_call.1} parent=1 // pred_check_branch
      %33 = sbr.rel (0) target = $region13
    $region12: #{tpu_custom_call.1} parent=1 // pred_region
      %34 = dma.done [#allocation4], 64
    $region13: #{tpu_custom_call.1} parent=1 // pred_fallthru
      _
    // Predicated region
    $region14: #{tpu_custom_call.1} parent=1 // pred_check
      _
    $region15: #{tpu_custom_call.1} parent=1 // pred_check_branch
      %36 = sbr.rel (0) target = $region17
    $region16: #{tpu_custom_call.1} parent=1 // pred_region
      %37 = dma.done [#allocation7], 20480
    $region17: #{tpu_custom_call.1} parent=1 // pred_fallthru
      _
    %p38 = scmp.eq.s32.totalorder 0, 0
    // Predicated region
    $region18: #{tpu_custom_call.1} parent=1 // pred_check
      %p39 = pneg %p38
    $region19: #{tpu_custom_call.1} parent=1 // pred_check_branch
      %41 = sbr.rel (%p39) target = $region21
    $region20: #{tpu_custom_call.1} parent=1 // pred_region
      %v42 = vlaneseq
      %vm43 = vcmp.ge.s32.totalorder %v42, 0
      %vm44 = vcmp.lt.s32.totalorder %v42, 640
      %vm45 = vmand %vm43, %vm44
      %46 = vst.msk [vmem:[#allocation2] sm:$0x1f] %vm45, 0.0
    $region21: #{tpu_custom_call.1} parent=1 // pred_fallthru
      _
    %v47 = vld [vmem:[#allocation3] ss:$2 sm:$0x3]
    %s48 = scalar_lea.vmem [#allocation3], 1
    %v49 = vld [vmem:[%s48] ss:$2 sm:$0x3]
    %v50 = vmul.f32 %v47, %v47
    %v51 = vmul.f32 %v49, %v49
    %v52 = vadd.f32 %v50, %v51
    %v53 = vld [vmem:[#allocation2] sm:$0x1f]
    %v54 = vld [vmem:[#allocation6] sm:$0xff]
    %v55 = vld [vmem:[#allocation6 + $0x8] sm:$0xff]
    %v56 = vld [vmem:[#allocation6 + $0x10] sm:$0xff]
    %v57 = vld [vmem:[#allocation6 + $0x18] sm:$0xff]
    %v58 = vld [vmem:[#allocation6 + $0x20] sm:$0xff]
    %v59 = vld [vmem:[#allocation6 + $0x28] sm:$0xff]
    %v60 = vld [vmem:[#allocation6 + $0x30] sm:$0xff]
    %v61 = vld [vmem:[#allocation6 + $0x38] sm:$0xff]
    %v62 = vld [vmem:[#allocation6 + $0x40] sm:$0xff]
    %v63 = vld [vmem:[#allocation6 + $0x48] sm:$0xff]
    %v64 = vld [vmem:[#allocation6 + $0x50] sm:$0xff]
    %v65 = vld [vmem:[#allocation6 + $0x58] sm:$0xff]
    %v66 = vld [vmem:[#allocation6 + $0x60] sm:$0xff]
    %v67 = vld [vmem:[#allocation6 + $0x68] sm:$0xff]
    %v68 = vld [vmem:[#allocation6 + $0x70] sm:$0xff]
    %v69 = vld [vmem:[#allocation6 + $0x78] sm:$0xff]
    %v70 = vld [vmem:[#allocation6 + $0x80] sm:$0xff]
    %v71 = vld [vmem:[#allocation6 + $0x88] sm:$0xff]
    %v72 = vld [vmem:[#allocation6 + $0x90] sm:$0xff]
    %v73 = vld [vmem:[#allocation6 + $0x98] sm:$0xff]
    %v74 = vld [vmem:[#allocation6 + $0xa0] sm:$0xff]
    %v75 = vld [vmem:[#allocation6 + $0xa8] sm:$0xff]
    %v76 = vld [vmem:[#allocation6 + $0xb0] sm:$0xff]
    %v77 = vld [vmem:[#allocation6 + $0xb8] sm:$0xff]
    %v78 = vld [vmem:[#allocation6 + $0xc0] sm:$0xff]
    %v79 = vld [vmem:[#allocation6 + $0xc8] sm:$0xff]
    %v80 = vld [vmem:[#allocation6 + $0xd0] sm:$0xff]
    %v81 = vld [vmem:[#allocation6 + $0xd8] sm:$0xff]
    %v82 = vld [vmem:[#allocation6 + $0xe0] sm:$0xff]
    %v83 = vld [vmem:[#allocation6 + $0xe8] sm:$0xff]
    %v84 = vld [vmem:[#allocation6 + $0xf0] sm:$0xff]
    %v85 = vld [vmem:[#allocation6 + $0xf8] sm:$0xff]
    %v86 = vld [vmem:[#allocation6 + $0x100] sm:$0xff]
    %v87 = vld [vmem:[#allocation6 + $0x108] sm:$0xff]
    %v88 = vld [vmem:[#allocation6 + $0x110] sm:$0xff]
    %v89 = vld [vmem:[#allocation6 + $0x118] sm:$0xff]
    %v90 = vld [vmem:[#allocation6 + $0x120] sm:$0xff]
    %v91 = vld [vmem:[#allocation6 + $0x128] sm:$0xff]
    %v92 = vld [vmem:[#allocation6 + $0x130] sm:$0xff]
    %v93 = vld [vmem:[#allocation6 + $0x138] sm:$0xff]
    %v94 = vld [vmem:[#allocation6 + $0x140] sm:$0xff]
    %v95 = vld [vmem:[#allocation6 + $0x148] sm:$0xff]
    %v96 = vld [vmem:[#allocation6 + $0x150] sm:$0xff]
    %v97 = vld [vmem:[#allocation6 + $0x158] sm:$0xff]
    %v98 = vld [vmem:[#allocation6 + $0x160] sm:$0xff]
    %v99 = vld [vmem:[#allocation6 + $0x168] sm:$0xff]
    %v100 = vld [vmem:[#allocation6 + $0x170] sm:$0xff]
    %v101 = vld [vmem:[#allocation6 + $0x178] sm:$0xff]
    %v102 = vld [vmem:[#allocation6 + $0x180] sm:$0xff]
    %v103 = vld [vmem:[#allocation6 + $0x188] sm:$0xff]
    %v104 = vld [vmem:[#allocation6 + $0x190] sm:$0xff]
    %v105 = vld [vmem:[#allocation6 + $0x198] sm:$0xff]
    %v106 = vld [vmem:[#allocation6 + $0x1a0] sm:$0xff]
    %v107 = vld [vmem:[#allocation6 + $0x1a8] sm:$0xff]
    %v108 = vld [vmem:[#allocation6 + $0x1b0] sm:$0xff]
    %v109 = vld [vmem:[#allocation6 + $0x1b8] sm:$0xff]
    %v110 = vld [vmem:[#allocation6 + $0x1c0] sm:$0xff]
    %v111 = vld [vmem:[#allocation6 + $0x1c8] sm:$0xff]
    %v112 = vld [vmem:[#allocation6 + $0x1d0] sm:$0xff]
    %v113 = vld [vmem:[#allocation6 + $0x1d8] sm:$0xff]
    %v114 = vld [vmem:[#allocation6 + $0x1e0] sm:$0xff]
    %v115 = vld [vmem:[#allocation6 + $0x1e8] sm:$0xff]
    %v116 = vld [vmem:[#allocation6 + $0x1f0] sm:$0xff]
    %v117 = vld [vmem:[#allocation6 + $0x1f8] sm:$0xff]
    %v118 = vld [vmem:[#allocation6 + $0x200] sm:$0xff]
    %v119 = vld [vmem:[#allocation6 + $0x208] sm:$0xff]
    %v120 = vld [vmem:[#allocation6 + $0x210] sm:$0xff]
    %v121 = vld [vmem:[#allocation6 + $0x218] sm:$0xff]
    %v122 = vld [vmem:[#allocation6 + $0x220] sm:$0xff]
    %v123 = vld [vmem:[#allocation6 + $0x228] sm:$0xff]
    %v124 = vld [vmem:[#allocation6 + $0x230] sm:$0xff]
    %v125 = vld [vmem:[#allocation6 + $0x238] sm:$0xff]
    %v126 = vld [vmem:[#allocation6 + $0x240] sm:$0xff]
    %v127 = vld [vmem:[#allocation6 + $0x248] sm:$0xff]
    %v128 = vld [vmem:[#allocation6 + $0x250] sm:$0xff]
    %v129 = vld [vmem:[#allocation6 + $0x258] sm:$0xff]
    %v130 = vld [vmem:[#allocation6 + $0x260] sm:$0xff]
    %v131 = vld [vmem:[#allocation6 + $0x268] sm:$0xff]
    %v132 = vld [vmem:[#allocation6 + $0x270] sm:$0xff]
    %v133 = vld [vmem:[#allocation6 + $0x278] sm:$0xff]
    %v134 = vld [vmem:[#allocation6 + $0x280] sm:$0xff]
    %v135 = vld [vmem:[#allocation6 + $0x288] sm:$0xff]
    %v136 = vld [vmem:[#allocation6 + $0x290] sm:$0xff]
    %v137 = vld [vmem:[#allocation6 + $0x298] sm:$0xff]
    %v138 = vld [vmem:[#allocation6 + $0x2a0] sm:$0xff]
    %v139 = vld [vmem:[#allocation6 + $0x2a8] sm:$0xff]
    %v140 = vld [vmem:[#allocation6 + $0x2b0] sm:$0xff]
    %v141 = vld [vmem:[#allocation6 + $0x2b8] sm:$0xff]
    %v142 = vld [vmem:[#allocation6 + $0x2c0] sm:$0xff]
    %v143 = vld [vmem:[#allocation6 + $0x2c8] sm:$0xff]
    %v144 = vld [vmem:[#allocation6 + $0x2d0] sm:$0xff]
    %v145 = vld [vmem:[#allocation6 + $0x2d8] sm:$0xff]
    %v146 = vld [vmem:[#allocation6 + $0x2e0] sm:$0xff]
    %v147 = vld [vmem:[#allocation6 + $0x2e8] sm:$0xff]
    %v148 = vld [vmem:[#allocation6 + $0x2f0] sm:$0xff]
    %v149 = vld [vmem:[#allocation6 + $0x2f8] sm:$0xff]
    %v150 = vld [vmem:[#allocation6 + $0x300] sm:$0xff]
    %v151 = vld [vmem:[#allocation6 + $0x308] sm:$0xff]
    %v152 = vld [vmem:[#allocation6 + $0x310] sm:$0xff]
    %v153 = vld [vmem:[#allocation6 + $0x318] sm:$0xff]
    %v154 = vld [vmem:[#allocation6 + $0x320] sm:$0xff]
    %v155 = vld [vmem:[#allocation6 + $0x328] sm:$0xff]
    %v156 = vld [vmem:[#allocation6 + $0x330] sm:$0xff]
    %v157 = vld [vmem:[#allocation6 + $0x338] sm:$0xff]
    %v158 = vld [vmem:[#allocation6 + $0x340] sm:$0xff]
    %v159 = vld [vmem:[#allocation6 + $0x348] sm:$0xff]
    %v160 = vld [vmem:[#allocation6 + $0x350] sm:$0xff]
    %v161 = vld [vmem:[#allocation6 + $0x358] sm:$0xff]
    %v162 = vld [vmem:[#allocation6 + $0x360] sm:$0xff]
    %v163 = vld [vmem:[#allocation6 + $0x368] sm:$0xff]
    %v164 = vld [vmem:[#allocation6 + $0x370] sm:$0xff]
    %v165 = vld [vmem:[#allocation6 + $0x378] sm:$0xff]
    %v166 = vld [vmem:[#allocation6 + $0x380] sm:$0xff]
    %v167 = vld [vmem:[#allocation6 + $0x388] sm:$0xff]
    %v168 = vld [vmem:[#allocation6 + $0x390] sm:$0xff]
    %v169 = vld [vmem:[#allocation6 + $0x398] sm:$0xff]
    %v170 = vld [vmem:[#allocation6 + $0x3a0] sm:$0xff]
    %v171 = vld [vmem:[#allocation6 + $0x3a8] sm:$0xff]
    %v172 = vld [vmem:[#allocation6 + $0x3b0] sm:$0xff]
    %v173 = vld [vmem:[#allocation6 + $0x3b8] sm:$0xff]
    %v174 = vld [vmem:[#allocation6 + $0x3c0] sm:$0xff]
    %v175 = vld [vmem:[#allocation6 + $0x3c8] sm:$0xff]
    %v176 = vld [vmem:[#allocation6 + $0x3d0] sm:$0xff]
    %v177 = vld [vmem:[#allocation6 + $0x3d8] sm:$0xff]
    %v178 = vld [vmem:[#allocation6 + $0x3e0] sm:$0xff]
    %v179 = vld [vmem:[#allocation6 + $0x3e8] sm:$0xff]
    %v180 = vld [vmem:[#allocation6 + $0x3f0] sm:$0xff]
    %v181 = vld [vmem:[#allocation6 + $0x3f8] sm:$0xff]
    %v182 = vld [vmem:[#allocation6 + $0x400] sm:$0xff]
    %v183 = vld [vmem:[#allocation6 + $0x408] sm:$0xff]
    %v184 = vld [vmem:[#allocation6 + $0x410] sm:$0xff]
    %v185 = vld [vmem:[#allocation6 + $0x418] sm:$0xff]
    %v186 = vld [vmem:[#allocation6 + $0x420] sm:$0xff]
    %v187 = vld [vmem:[#allocation6 + $0x428] sm:$0xff]
    %v188 = vld [vmem:[#allocation6 + $0x430] sm:$0xff]
    %v189 = vld [vmem:[#allocation6 + $0x438] sm:$0xff]
    %v190 = vld [vmem:[#allocation6 + $0x440] sm:$0xff]
    %v191 = vld [vmem:[#allocation6 + $0x448] sm:$0xff]
    %v192 = vld [vmem:[#allocation6 + $0x450] sm:$0xff]
    %v193 = vld [vmem:[#allocation6 + $0x458] sm:$0xff]
    %v194 = vld [vmem:[#allocation6 + $0x460] sm:$0xff]
    %v195 = vld [vmem:[#allocation6 + $0x468] sm:$0xff]
    %v196 = vld [vmem:[#allocation6 + $0x470] sm:$0xff]
    %v197 = vld [vmem:[#allocation6 + $0x478] sm:$0xff]
    %v198 = vld [vmem:[#allocation6 + $0x480] sm:$0xff]
    %v199 = vld [vmem:[#allocation6 + $0x488] sm:$0xff]
    %v200 = vld [vmem:[#allocation6 + $0x490] sm:$0xff]
    %v201 = vld [vmem:[#allocation6 + $0x498] sm:$0xff]
    %v202 = vld [vmem:[#allocation6 + $0x4a0] sm:$0xff]
    %v203 = vld [vmem:[#allocation6 + $0x4a8] sm:$0xff]
    %v204 = vld [vmem:[#allocation6 + $0x4b0] sm:$0xff]
    %v205 = vld [vmem:[#allocation6 + $0x4b8] sm:$0xff]
    %v206 = vld [vmem:[#allocation6 + $0x4c0] sm:$0xff]
    %v207 = vld [vmem:[#allocation6 + $0x4c8] sm:$0xff]
    %v208 = vld [vmem:[#allocation6 + $0x4d0] sm:$0xff]
    %v209 = vld [vmem:[#allocation6 + $0x4d8] sm:$0xff]
    %v210 = vld [vmem:[#allocation6 + $0x4e0] sm:$0xff]
    %v211 = vld [vmem:[#allocation6 + $0x4e8] sm:$0xff]
    %v212 = vld [vmem:[#allocation6 + $0x4f0] sm:$0xff]
    %v213 = vld [vmem:[#allocation6 + $0x4f8] sm:$0xff]
    %v215 = vlaneseq
    %v216 = vshrl.u32 %v215, 7
    %v217 = vsub.s32 0, %v216
    %v218 = vrot.slane %v52, %v217
    %v219 = vlaneseq
    %v220 = vshrl.u32 %v219, 7
    %v221 = vsub.s32 1, %v220
    %v222 = vrot.slane %v52, %v221
    %225 = vmatprep.subr.mxu0 %v55
    %226 = vmatpush1.msra.mxu0 %v54
    %227 = vmatprep.subr.mxu0 %v60
    %228 = vmatpush1.msra.mxu0 %v59
    %229 = vmatprep.subr.mxu0 %v65
    %230 = vmatpush1.msra.mxu0 %v64
    %231 = vmatprep.subr.mxu0 %v70
    %232 = vmatpush1.msra.mxu0 %v69
    %233 = vmatprep.subr.mxu0 %v75
    %234 = vmatpush1.msra.mxu0 %v74
    %235 = vmatprep.subr.mxu0 %v80
    %236 = vmatpush1.msra.mxu0 %v79
    %237 = vmatprep.subr.mxu0 %v85
    %238 = vmatpush1.msra.mxu0 %v84
    %239 = vmatprep.subr.mxu0 %v90
    %240 = vmatpush1.msra.mxu0 %v89
    %241 = vmatprep.subr.mxu0 %v95
    %242 = vmatpush1.msra.mxu0 %v94
    %243 = vmatprep.subr.mxu0 %v100
    %244 = vmatpush1.msra.mxu0 %v99
    %245 = vmatprep.subr.mxu0 %v105
    %246 = vmatpush1.msra.mxu0 %v104
    %247 = vmatprep.subr.mxu0 %v110
    %248 = vmatpush1.msra.mxu0 %v109
    %249 = vmatprep.subr.mxu0 %v115
    %250 = vmatpush1.msra.mxu0 %v114
    %251 = vmatprep.subr.mxu0 %v120
    %252 = vmatpush1.msra.mxu0 %v119
    %253 = vmatprep.subr.mxu0 %v125
    %254 = vmatpush1.msra.mxu0 %v124
    %255 = vmatprep.subr.mxu0 %v130
    %256 = vmatpush1.msra.mxu0 %v129
    %257 = vmatprep.subr.mxu0 %v135
    %258 = vmatpush1.msra.mxu0 %v134
    %259 = vmatprep.subr.mxu0 %v140
    %260 = vmatpush1.msra.mxu0 %v139
    %261 = vmatprep.subr.mxu0 %v145
    %262 = vmatpush1.msra.mxu0 %v144
    %263 = vmatprep.subr.mxu0 %v150
    %264 = vmatpush1.msra.mxu0 %v149
    %265 = vmatprep.subr.mxu0 %v155
    %266 = vmatpush1.msra.mxu0 %v154
    %267 = vmatprep.subr.mxu0 %v160
    %268 = vmatpush1.msra.mxu0 %v159
    %269 = vmatprep.subr.mxu0 %v165
    %270 = vmatpush1.msra.mxu0 %v164
    %271 = vmatprep.subr.mxu0 %v170
    %272 = vmatpush1.msra.mxu0 %v169
    %273 = vmatprep.subr.mxu0 %v175
    %274 = vmatpush1.msra.mxu0 %v174
    %275 = vmatprep.subr.mxu0 %v180
    %276 = vmatpush1.msra.mxu0 %v179
    %277 = vmatprep.subr.mxu0 %v185
    %278 = vmatpush1.msra.mxu0 %v184
    %279 = vmatprep.subr.mxu0 %v190
    %280 = vmatpush1.msra.mxu0 %v189
    %281 = vmatprep.subr.mxu0 %v195
    %282 = vmatpush1.msra.mxu0 %v194
    %283 = vmatprep.subr.mxu0 %v200
    %284 = vmatpush1.msra.mxu0 %v199
    %285 = vmatprep.subr.mxu0 %v205
    %286 = vmatpush1.msra.mxu0 %v204
    %287 = vmatprep.subr.mxu0 %v210
    %288 = vmatpush1.msra.mxu0 %v209
    %289 = vmatprep.mubr.f32.mxu0 %v222
    %290 = vmatmul.mubr.f32.gmra.mrb[0].mxu0 %v218
    %v291 = vpop.f32.mrb[0].mxu0
    %v292 = vadd.f32 0.0, %v291
    %v293 = vpop.f32.mrb[0].mxu0
    %v294 = vadd.f32 0.0, %v293
    %295 = vdwg.mxu0
    %296 = vmatprep.subr.mxu0 %v57
    %297 = vmatpush1.msra.mxu0 %v56
    %298 = vmatprep.subr.mxu0 %v62
    %299 = vmatpush1.msra.mxu0 %v61
    %300 = vmatprep.subr.mxu0 %v67
    %301 = vmatpush1.msra.mxu0 %v66
    %302 = vmatprep.subr.mxu0 %v72
    %303 = vmatpush1.msra.mxu0 %v71
    %304 = vmatprep.subr.mxu0 %v77
    %305 = vmatpush1.msra.mxu0 %v76
    %306 = vmatprep.subr.mxu0 %v82
    %307 = vmatpush1.msra.mxu0 %v81
    %308 = vmatprep.subr.mxu0 %v87
    %309 = vmatpush1.msra.mxu0 %v86
    %310 = vmatprep.subr.mxu0 %v92
    %311 = vmatpush1.msra.mxu0 %v91
    %312 = vmatprep.subr.mxu0 %v97
    %313 = vmatpush1.msra.mxu0 %v96
    %314 = vmatprep.subr.mxu0 %v102
    %315 = vmatpush1.msra.mxu0 %v101
    %316 = vmatprep.subr.mxu0 %v107
    %317 = vmatpush1.msra.mxu0 %v106
    %318 = vmatprep.subr.mxu0 %v112
    %319 = vmatpush1.msra.mxu0 %v111
    %320 = vmatprep.subr.mxu0 %v117
    %321 = vmatpush1.msra.mxu0 %v116
    %322 = vmatprep.subr.mxu0 %v122
    %323 = vmatpush1.msra.mxu0 %v121
    %324 = vmatprep.subr.mxu0 %v127
    %325 = vmatpush1.msra.mxu0 %v126
    %326 = vmatprep.subr.mxu0 %v132
    %327 = vmatpush1.msra.mxu0 %v131
    %328 = vmatprep.subr.mxu0 %v137
    %329 = vmatpush1.msra.mxu0 %v136
    %330 = vmatprep.subr.mxu0 %v142
    %331 = vmatpush1.msra.mxu0 %v141
    %332 = vmatprep.subr.mxu0 %v147
    %333 = vmatpush1.msra.mxu0 %v146
    %334 = vmatprep.subr.mxu0 %v152
    %335 = vmatpush1.msra.mxu0 %v151
    %336 = vmatprep.subr.mxu0 %v157
    %337 = vmatpush1.msra.mxu0 %v156
    %338 = vmatprep.subr.mxu0 %v162
    %339 = vmatpush1.msra.mxu0 %v161
    %340 = vmatprep.subr.mxu0 %v167
    %341 = vmatpush1.msra.mxu0 %v166
    %342 = vmatprep.subr.mxu0 %v172
    %343 = vmatpush1.msra.mxu0 %v171
    %344 = vmatprep.subr.mxu0 %v177
    %345 = vmatpush1.msra.mxu0 %v176
    %346 = vmatprep.subr.mxu0 %v182
    %347 = vmatpush1.msra.mxu0 %v181
    %348 = vmatprep.subr.mxu0 %v187
    %349 = vmatpush1.msra.mxu0 %v186
    %350 = vmatprep.subr.mxu0 %v192
    %351 = vmatpush1.msra.mxu0 %v191
    %352 = vmatprep.subr.mxu0 %v197
    %353 = vmatpush1.msra.mxu0 %v196
    %354 = vmatprep.subr.mxu0 %v202
    %355 = vmatpush1.msra.mxu0 %v201
    %356 = vmatprep.subr.mxu0 %v207
    %357 = vmatpush1.msra.mxu0 %v206
    %358 = vmatprep.subr.mxu0 %v212
    %359 = vmatpush1.msra.mxu0 %v211
    %360 = vmatprep.mubr.f32.mxu0 %v222
    %361 = vmatmul.mubr.f32.gmra.mrb[0].mxu0 %v218
    %v362 = vpop.f32.mrb[0].mxu0
    %v363 = vadd.f32 0.0, %v362
    %v364 = vpop.f32.mrb[0].mxu0
    %v365 = vadd.f32 0.0, %v364
    %366 = vdwg.mxu0
    %367 = vmatprep.subr.mxu0 0.0
    %368 = vmatpush1.msra.mxu0 %v58
    %369 = vmatprep.subr.mxu0 0.0
    %370 = vmatpush1.msra.mxu0 %v63
    %371 = vmatprep.subr.mxu0 0.0
    %372 = vmatpush1.msra.mxu0 %v68
    %373 = vmatprep.subr.mxu0 0.0
    %374 = vmatpush1.msra.mxu0 %v73
    %375 = vmatprep.subr.mxu0 0.0
    %376 = vmatpush1.msra.mxu0 %v78
    %377 = vmatprep.subr.mxu0 0.0
    %378 = vmatpush1.msra.mxu0 %v83
    %379 = vmatprep.subr.mxu0 0.0
    %380 = vmatpush1.msra.mxu0 %v88
    %381 = vmatprep.subr.mxu0 0.0
    %382 = vmatpush1.msra.mxu0 %v93
    %383 = vmatprep.subr.mxu0 0.0
    %384 = vmatpush1.msra.mxu0 %v98
    %385 = vmatprep.subr.mxu0 0.0
    %386 = vmatpush1.msra.mxu0 %v103
    %387 = vmatprep.subr.mxu0 0.0
    %388 = vmatpush1.msra.mxu0 %v108
    %389 = vmatprep.subr.mxu0 0.0
    %390 = vmatpush1.msra.mxu0 %v113
    %391 = vmatprep.subr.mxu0 0.0
    %392 = vmatpush1.msra.mxu0 %v118
    %393 = vmatprep.subr.mxu0 0.0
    %394 = vmatpush1.msra.mxu0 %v123
    %395 = vmatprep.subr.mxu0 0.0
    %396 = vmatpush1.msra.mxu0 %v128
    %397 = vmatprep.subr.mxu0 0.0
    %398 = vmatpush1.msra.mxu0 %v133
    %399 = vmatprep.subr.mxu0 0.0
    %400 = vmatpush1.msra.mxu0 %v138
    %401 = vmatprep.subr.mxu0 0.0
    %402 = vmatpush1.msra.mxu0 %v143
    %403 = vmatprep.subr.mxu0 0.0
    %404 = vmatpush1.msra.mxu0 %v148
    %405 = vmatprep.subr.mxu0 0.0
    %406 = vmatpush1.msra.mxu0 %v153
    %407 = vmatprep.subr.mxu0 0.0
    %408 = vmatpush1.msra.mxu0 %v158
    %409 = vmatprep.subr.mxu0 0.0
    %410 = vmatpush1.msra.mxu0 %v163
    %411 = vmatprep.subr.mxu0 0.0
    %412 = vmatpush1.msra.mxu0 %v168
    %413 = vmatprep.subr.mxu0 0.0
    %414 = vmatpush1.msra.mxu0 %v173
    %415 = vmatprep.subr.mxu0 0.0
    %416 = vmatpush1.msra.mxu0 %v178
    %417 = vmatprep.subr.mxu0 0.0
    %418 = vmatpush1.msra.mxu0 %v183
    %419 = vmatprep.subr.mxu0 0.0
    %420 = vmatpush1.msra.mxu0 %v188
    %421 = vmatprep.subr.mxu0 0.0
    %422 = vmatpush1.msra.mxu0 %v193
    %423 = vmatprep.subr.mxu0 0.0
    %424 = vmatpush1.msra.mxu0 %v198
    %425 = vmatprep.subr.mxu0 0.0
    %426 = vmatpush1.msra.mxu0 %v203
    %427 = vmatprep.subr.mxu0 0.0
    %428 = vmatpush1.msra.mxu0 %v208
    %429 = vmatprep.subr.mxu0 0.0
    %430 = vmatpush1.msra.mxu0 %v213
    %431 = vmatprep.mubr.f32.mxu0 %v222
    %432 = vmatmul.mubr.f32.gmra.mrb[0].mxu0 %v218
    %v433 = vpop.f32.mrb[0].mxu0
    %v434 = vadd.f32 0.0, %v433
    %v435 = vpop.f32.mrb[0].mxu0
    %436 = vdwg.mxu0
    %v442 = vcombine.low %v292, %v294
    %v443 = vcombine.low %v363, %v365
    %v445 = vunpack.c.l.s4 1966171168
    %v446 = vunpack.c.0.s8 %v445
    %v447 = vlaneseq
    %v448 = vshrl.u32 %v447, 7
    %v449 = vsub.s32 %v446, %v448
    %v450 = vrot.slane %v442, %v449
    %v452 = vunpack.c.l.s4 1966171168
    %v453 = vunpack.c.0.s8 %v452
    %v454 = vlaneseq
    %v455 = vshrl.u32 %v454, 7
    %v456 = vsub.s32 %v453, %v455
    %v457 = vrot.slane %v443, %v456
    %v459 = vunpack.c.l.s4 1966171168
    %v460 = vunpack.c.0.s8 %v459
    %v461 = vlaneseq
    %v462 = vshrl.u32 %v461, 7
    %v463 = vsub.s32 %v460, %v462
    %v464 = vrot.slane %v434, %v463
    %v465 = vcombine.low %v450, %v457
    %v467 = vunpack.c.l.s4 1966171168
    %v468 = vunpack.c.0.s8 %v467
    %v469 = vlaneseq
    %v470 = vshrl.u32 %v469, 7
    %v471 = vsub.s32 %v468, %v470
    %v472 = vrot.slane %v465, %v471
    %v474 = vunpack.c.l.s4 1966171168
    %v475 = vunpack.c.0.s8 %v474
    %v476 = vlaneseq
    %v477 = vshrl.u32 %v476, 7
    %v478 = vsub.s32 %v475, %v477
    %v479 = vrot.slane %v464, %v478
    %v480 = vcombine.low %v472, %v479
    %v482 = vadd.f32 %v53, %v480
    %v483 = vlaneseq
    %vm484 = vcmp.ge.s32.totalorder %v483, 0
    %vm485 = vcmp.lt.s32.totalorder %v483, 640
    %vm486 = vmand %vm484, %vm485
    %487 = vst.msk [vmem:[#allocation2] sm:$0x1f] %vm486, %v482
    // Predicated region
    $region22: #{tpu_custom_call.1} parent=1 // pred_check
      %p488 = pneg %p38
    $region23: #{tpu_custom_call.1} parent=1 // pred_check_branch
      %490 = sbr.rel (%p488) target = $region25
    $region24: #{tpu_custom_call.1} parent=1 // pred_region
      %v491 = vld [vmem:[#allocation2] sm:$0x1f]
      %vm492 = vcmp.lt.s32.totalorder %v483, 128
      %vm493 = vmand %vm484, %vm492
      %494 = vst.msk [vmem:[#allocation8] sm:$0x1] %vm493, %v491
      %v496 = vrot.slane %v491, 1
      %v498 = vmul.f32 %v496, %v496
      %v499 = vrot.slane %v491, 2
      %v501 = vmul.f32 %v499, %v499
      %v502 = vadd.f32 %v498, %v501
      %503 = vst.msk [vmem:[#allocation8 + $0x1] sm:$0x1] %vm493, %v502
      %v504 = vrot.slane %v491, 3
      %v506 = vmul.f32 %v504, %v504
      %v507 = vrot.slane %v491, 4
      %v509 = vmul.f32 %v507, %v507
      %v510 = vadd.f32 %v506, %v509
      %511 = vst.msk [vmem:[#allocation8 + $0x2] sm:$0x1] %vm493, %v510
    $region25: #{tpu_custom_call.1} parent=1 // pred_fallthru
      _
    // Predicated region
    $region26: #{tpu_custom_call.1} parent=1 // pred_check
      _
    $region27: #{tpu_custom_call.1} parent=1 // pred_check_branch
      %513 = sbr.rel (0) target = $region29
    $region28: #{tpu_custom_call.1} parent=1 // pred_region
      %s515 = ssub.s32 48, 48
      %516 = vsyncadd [#allocation5], %s515
      %s518 = sshll.u32 [#allocation8], 4
      %s519 = int_to_ptr.vmem [resolvable:$true] %s518
      %521 = dma.vmem_to_hbm [thread:$0]  %s519, 48, %s2, [#allocation5]
    $region29: #{tpu_custom_call.1} parent=1 // pred_fallthru
      _
    // Predicated region
    $region30: #{tpu_custom_call.1} parent=1 // pred_check
      _
    $region31: #{tpu_custom_call.1} parent=1 // pred_check_branch
      %523 = sbr.rel (0) target = $region33
    $region32: #{tpu_custom_call.1} parent=1 // pred_region
      %524 = dma.done [#allocation5], 48
    $region33: #{tpu_custom_call.1} parent=1 // pred_fallthru
      _
    %525 = vsyncpa [#allocation4], 1
    %526 = vsyncpa [#allocation7], 1
    %527 = vsyncpa [#allocation5], 1

</llo_original>
